<compile_context>
chip_gen: v5e
topology: v5e:2x2
jax: 0.10.0
libtpu: 0.0.40
codegen_flags: <defaults>
</compile_context>

<pallas_src>
import functools

import jax
import jax.numpy as jnp
from jax.experimental import pallas as pl
from jax.experimental.pallas import tpu as pltpu


def channel_attention_kernel(x_ref, w1t_ref, w2t_ref, o_ref, *,
                             hw_chunk, n_chunks, inv_hw):
    # x_ref:   (Bt, C, HW)   input dtype (f32 or bf16)
    # w1t_ref: (C, Cr)  f32  fc1 1x1-conv weight, pre-transposed
    # w2t_ref: (Cr, C)  f32  fc2 1x1-conv weight, pre-transposed
    # o_ref:   (Bt, C, HW)   same dtype as x_ref
    bt, c, _ = x_ref.shape
    unroll = n_chunks <= 8

    # ---- Pass 1: fused sum+max pooling, one vld sweep over the VMEM block. ----
    # Each chunk is loaded once and feeds both running reductions, so the block
    # is never materialized as a single live value (no vreg spills).
    def pool_body(i, carry):
        s, m = carry
        start = pl.multiple_of(i * hw_chunk, hw_chunk)
        xs = x_ref[:, :, pl.ds(start, hw_chunk)].astype(jnp.float32)
        return (s + jnp.sum(xs, axis=-1),
                jnp.maximum(m, jnp.max(xs, axis=-1)))

    s0 = jnp.zeros((bt, c), jnp.float32)
    m0 = jnp.full((bt, c), -jnp.inf, jnp.float32)
    s, m = jax.lax.fori_loop(0, n_chunks, pool_body, (s0, m0), unroll=unroll)
    avg = s * inv_hw                                     # block spans full HW

    # ---- Shared MLP on both pooled vectors via one (2*Bt, C) matmul chain. ----
    pooled = jnp.concatenate([avg, m], axis=0)           # (2*Bt, C)
    h = jnp.maximum(
        jnp.dot(pooled, w1t_ref[...], preferred_element_type=jnp.float32),
        0.0)                                             # (2*Bt, Cr)
    out = jnp.dot(h, w2t_ref[...],
                  preferred_element_type=jnp.float32)    # (2*Bt, C)
    scale = jax.nn.sigmoid(out[:bt] + out[bt:])          # (Bt, C) avg_out+max_out

    # ---- Pass 2: gate + store, re-reading x_ref per chunk (cheap vld, lane-
    # dense stores), instead of keeping the whole block live since pass 1. ----
    def mul_body(i, carry):
        start = pl.multiple_of(i * hw_chunk, hw_chunk)
        xs = x_ref[:, :, pl.ds(start, hw_chunk)].astype(jnp.float32)
        o_ref[:, :, pl.ds(start, hw_chunk)] = (
            xs * scale[:, :, None]).astype(o_ref.dtype)
        return carry

    jax.lax.fori_loop(0, n_chunks, mul_body, 0, unroll=unroll)


def _vmem_capacity_bytes():
    try:
        return int(pltpu.get_tpu_info().vmem_capacity_bytes)
    except Exception:
        return 64 * 1024 * 1024  # conservative fallback (v7x per-core VMEM)


def _pick_hw_chunk(hw, row_bytes, target_chunk_bytes=128 * 1024):
    """Largest 128-multiple chunk that divides HW and keeps one (Bt, C, chunk)
    slice within ~half the vreg file so the reduction sweep never spills."""
    if hw % 128 != 0:
        return hw, 1  # unaligned HW: block equals the full dim, single chunk
    max_lanes = max(128, (target_chunk_bytes // max(row_bytes, 1)) // 128 * 128)
    chunk = 128
    cand = min(hw, max_lanes)
    while cand >= 128:
        if hw % cand == 0:
            chunk = cand
            break
        cand -= 128
    return chunk, hw // chunk


def channel_attention(x_nchw, w1, w2, *, vmem_budget_bytes=None,
                      target_grid_steps=8):
    """x_nchw: (B, C, H, W); w1: (C//r, C); w2: (C, C//r) (bias-free 1x1 convs)."""
    B, C, H, W = x_nchw.shape
    HW = H * W
    x = x_nchw.reshape(B, C, HW)
    dtype = x.dtype
    itemsize = jnp.dtype(dtype).itemsize

    # Pre-transpose the (squeezed) 1x1-conv weights once on the host side so
    # the kernel needs no in-kernel transposes.
    w1t = jnp.transpose(w1).astype(jnp.float32)          # (C, Cr)
    w2t = jnp.transpose(w2).astype(jnp.float32)          # (Cr, C)

    capacity = _vmem_capacity_bytes()
    budget = (vmem_budget_bytes if vmem_budget_bytes is not None
              else capacity // 2)                        # ~50% of physical VMEM

    slab_bytes = C * HW * itemsize                       # one batch element
    weight_bytes = (w1t.size + w2t.size) * 4

    # Batch tile Bt: keep the grid >= min(B, target_grid_steps) steps so Pallas
    # overlaps prefetch/compute/writeback across steps (and v7x can shard the
    # parallel batch axis across both TensorCores); within that cap, take the
    # largest divisor of B whose double-buffered in+out blocks fit the budget.
    target_steps = max(1, min(B, target_grid_steps))
    max_bt = max(1, B // target_steps)
    Bt = None
    for bt in range(max_bt, 0, -1):
        if B % bt == 0 and 4 * bt * slab_bytes + 2 * weight_bytes <= budget:
            Bt = bt
            break
    if Bt is None:
        # TODO(synk): chunked-HW streaming path (pl.ANY x + manual double-buffer:
        # pool-accumulate pass, then scale+multiply pass) for slabs that exceed
        # VMEM even at Bt=1 (realistic on v7x's 64 MiB VMEM).
        raise NotImplementedError(
            f"one batch element ({slab_bytes} B) exceeds the VMEM budget "
            f"({budget} B); chunked-HW streaming fallback not implemented")

    grid = (B // Bt,)
    needed = 4 * Bt * slab_bytes + 2 * weight_bytes      # dbl-buffered in+out + w
    vmem_limit = int(min(max(needed + (2 << 20), 16 << 20),
                         int(capacity * 0.6)))

    hw_chunk, n_chunks = _pick_hw_chunk(HW, Bt * C * itemsize)

    kernel = functools.partial(
        channel_attention_kernel,
        hw_chunk=hw_chunk, n_chunks=n_chunks, inv_hw=1.0 / HW)

    out = pl.pallas_call(
        kernel,
        out_shape=jax.ShapeDtypeStruct((B, C, HW), dtype),
        grid_spec=pltpu.PrefetchScalarGridSpec(
            num_scalar_prefetch=0,
            grid=grid,
            in_specs=[
                pl.BlockSpec((Bt, C, HW), lambda b: (b, 0, 0)),
                pl.BlockSpec(w1t.shape, lambda b: (0, 0)),  # tiny, resident
                pl.BlockSpec(w2t.shape, lambda b: (0, 0)),  # tiny, resident
            ],
            out_specs=pl.BlockSpec((Bt, C, HW), lambda b: (b, 0, 0)),
        ),
        compiler_params=pltpu.CompilerParams(
            dimension_semantics=("parallel",),
            vmem_limit_bytes=vmem_limit,
        ),
    )(x, w1t, w2t)
    return out.reshape(B, C, H, W)


def channel_attention_ref(x, w1, w2):
    # Pure-JAX reference mirroring the PyTorch forward.
    avg = jnp.mean(x, axis=(2, 3), keepdims=True)        # (B, C, 1, 1)
    mx = jnp.max(x, axis=(2, 3), keepdims=True)          # (B, C, 1, 1)

    def mlp(p):                                          # p: (B, C, 1, 1)
        p = p[:, :, 0, 0]                                # (B, C)
        h = jnp.maximum(p @ w1.T, 0.0)                   # (B, C//r)
        o = h @ w2.T                                     # (B, C)
        return o[:, :, None, None]

    out = mlp(avg) + mlp(mx)
    return x * jax.nn.sigmoid(out)


if __name__ == "__main__":
    key = jax.random.PRNGKey(0)
    B, C, H, W = 2, 32, 16, 16
    ratio = 16
    Cr = C // ratio

    kx, k1, k2 = jax.random.split(key, 3)
    x = jax.random.normal(kx, (B, C, H, W), dtype=jnp.float32)
    # 1x1 convs with no bias == dense layers; weights are the squeezed conv kernels.
    w1 = jax.random.normal(k1, (Cr, C), dtype=jnp.float32) * 0.1   # fc1 weight
    w2 = jax.random.normal(k2, (C, Cr), dtype=jnp.float32) * 0.1   # fc2 weight

    out = channel_attention(x, w1, w2)
    out = jax.block_until_ready(out)

    ref = channel_attention_ref(x, w1, w2)
    assert out.shape == (B, C, H, W)
    assert jnp.allclose(out, ref, atol=1e-5, rtol=1e-5)

    print("KERNEL_OK")
</pallas_src>

<mosaic_0001>
module attributes {stable_mosaic.version = 11 : i64} {
  func.func @channel_attention_kernel(%arg0: i32, %arg1: memref<1x32x256xf32, #tpu.memory_space<vmem>>, %arg2: memref<32x2xf32, #tpu.memory_space<vmem>>, %arg3: memref<2x32xf32, #tpu.memory_space<vmem>>, %arg4: memref<1x32x256xf32, #tpu.memory_space<vmem>>) attributes {dimension_semantics = [#tpu.dimension_semantics<parallel>], iteration_bounds = array<i64: 2>, scalar_prefetch = 0 : i64, scratch_operands = 0 : i64, tpu.core_type = #tpu.core_type<tc>, window_params = [{transform_indices = @transform_0, window_bounds = array<i64: 1, 32, 256>}, {pipeline_mode = #tpu.pipeline_mode<synchronous>, transform_indices = @transform_1, window_bounds = array<i64: 32, 2>}, {pipeline_mode = #tpu.pipeline_mode<synchronous>, transform_indices = @transform_2, window_bounds = array<i64: 2, 32>}, {transform_indices = @transform_3, window_bounds = array<i64: 1, 32, 256>}]} {
    %cst = arith.constant 0.000000e+00 : f32
    %0 = vector.broadcast %cst : f32 to vector<1x32xf32>
    %cst_0 = arith.constant 0xFF800000 : f32
    %1 = vector.broadcast %cst_0 : f32 to vector<1x32xf32>
    %c0_i32 = arith.constant 0 : i32
    %c256_i32 = arith.constant 256 : i32
    %2 = arith.muli %c0_i32, %c256_i32 : i32
    %3 = tpu.assume_multiple %2, 256 : i32
    %c0 = arith.constant 0 : index
    %c0_1 = arith.constant 0 : index
    %4 = arith.index_cast %3 : i32 to index
    %5 = vector.load %arg1[%c0, %c0_1, %4] : memref<1x32x256xf32, #tpu.memory_space<vmem>>, vector<1x32x256xf32>
    %cst_2 = arith.constant dense<0.000000e+00> : vector<1x32xf32>
    %6 = vector.multi_reduction <add>, %5, %cst_2 [2] : vector<1x32x256xf32> to vector<1x32xf32>
    %7 = arith.addf %0, %6 : vector<1x32xf32>
    %cst_3 = arith.constant dense<0xFF800000> : vector<1x32xf32>
    %8 = vector.multi_reduction <maximumf>, %5, %cst_3 [2] : vector<1x32x256xf32> to vector<1x32xf32>
    %9 = arith.maximumf %1, %8 : vector<1x32xf32>
    %c1_i32 = arith.constant 1 : i32
    %cst_4 = arith.constant 3.906250e-03 : f32
    %10 = vector.broadcast %cst_4 : f32 to vector<1x32xf32>
    %11 = arith.mulf %7, %10 : vector<1x32xf32>
    %12 = tpu.concatenate %11, %9 in 0 : vector<1x32xf32>, vector<1x32xf32> -> vector<2x32xf32>
    %c0_5 = arith.constant 0 : index
    %c0_6 = arith.constant 0 : index
    %13 = vector.load %arg2[%c0_5, %c0_6] : memref<32x2xf32, #tpu.memory_space<vmem>>, vector<32x2xf32>
    %cst_7 = arith.constant dense<0.000000e+00> : vector<2x2xf32>
    %14 = tpu.matmul %12, %13, %cst_7 {dimension_numbers = #tpu.dot_dimension_numbers<[1], [0], [0], [1], [0, 0, 1, 1], [], []>} : vector<2x32xf32>, vector<32x2xf32>, vector<2x2xf32> -> vector<2x2xf32>
    %cst_8 = arith.constant 0.000000e+00 : f32
    %15 = vector.broadcast %cst_8 : f32 to vector<2x2xf32>
    %16 = arith.maximumf %14, %15 : vector<2x2xf32>
    %c0_9 = arith.constant 0 : index
    %c0_10 = arith.constant 0 : index
    %17 = vector.load %arg3[%c0_9, %c0_10] : memref<2x32xf32, #tpu.memory_space<vmem>>, vector<2x32xf32>
    %cst_11 = arith.constant dense<0.000000e+00> : vector<2x32xf32>
    %18 = tpu.matmul %16, %17, %cst_11 {dimension_numbers = #tpu.dot_dimension_numbers<[1], [0], [0], [1], [0, 0, 1, 1], [], []>} : vector<2x2xf32>, vector<2x32xf32>, vector<2x32xf32> -> vector<2x32xf32>
    %19 = vector.extract_strided_slice %18 {offsets = [0, 0], sizes = [1, 32], strides = [1, 1]} : vector<2x32xf32> to vector<1x32xf32>
    %20 = vector.extract_strided_slice %18 {offsets = [1, 0], sizes = [1, 32], strides = [1, 1]} : vector<2x32xf32> to vector<1x32xf32>
    %21 = arith.addf %19, %20 : vector<1x32xf32>
    %22 = arith.negf %21 : vector<1x32xf32>
    %23 = math.exp %22 : vector<1x32xf32>
    %cst_12 = arith.constant 1.000000e+00 : f32
    %24 = vector.broadcast %cst_12 : f32 to vector<1x32xf32>
    %25 = arith.addf %24, %23 : vector<1x32xf32>
    %26 = arith.divf %24, %25 : vector<1x32xf32>
    %c0_i32_13 = arith.constant 0 : i32
    %c256_i32_14 = arith.constant 256 : i32
    %27 = arith.muli %c0_i32_13, %c256_i32_14 : i32
    %28 = tpu.assume_multiple %27, 256 : i32
    %c0_15 = arith.constant 0 : index
    %c0_16 = arith.constant 0 : index
    %29 = arith.index_cast %28 : i32 to index
    %30 = vector.load %arg1[%c0_15, %c0_16, %29] : memref<1x32x256xf32, #tpu.memory_space<vmem>>, vector<1x32x256xf32>
    %31 = vector.shape_cast %26 : vector<1x32xf32> to vector<1x32x1xf32>
    %32 = vector.broadcast %31 : vector<1x32x1xf32> to vector<1x32x256xf32>
    %33 = arith.mulf %30, %32 : vector<1x32x256xf32>
    %c0_17 = arith.constant 0 : index
    %c0_18 = arith.constant 0 : index
    %34 = arith.index_cast %28 : i32 to index
    %35 = vector.load %arg4[%c0_17, %c0_18, %34] : memref<1x32x256xf32, #tpu.memory_space<vmem>>, vector<1x32x256xf32>
    tpu.vector_store %arg4[%c0_17, %c0_18, %34], %33 {strides = array<i32>} : memref<1x32x256xf32, #tpu.memory_space<vmem>>, vector<1x32x256xf32>,
    %c1_i32_19 = arith.constant 1 : i32
    return
  }
  func.func @transform_0(%arg0: i32) -> (i32, i32, i32) {
    %c0_i32 = arith.constant 0 : i32
    %c0_i32_0 = arith.constant 0 : i32
    %c0_i32_1 = arith.constant 0 : i32
    return %arg0, %c0_i32, %c0_i32_0 : i32, i32, i32
  }
  func.func @transform_1(%arg0: i32) -> (i32, i32) {
    %c0_i32 = arith.constant 0 : i32
    %c0_i32_0 = arith.constant 0 : i32
    %c0_i32_1 = arith.constant 0 : i32
    return %c0_i32, %c0_i32_0 : i32, i32
  }
  func.func @transform_2(%arg0: i32) -> (i32, i32) {
    %c0_i32 = arith.constant 0 : i32
    %c0_i32_0 = arith.constant 0 : i32
    %c0_i32_1 = arith.constant 0 : i32
    return %c0_i32, %c0_i32_0 : i32, i32
  }
  func.func @transform_3(%arg0: i32) -> (i32, i32, i32) {
    %c0_i32 = arith.constant 0 : i32
    %c0_i32_0 = arith.constant 0 : i32
    %c0_i32_1 = arith.constant 0 : i32
    return %arg0, %c0_i32, %c0_i32_0 : i32, i32, i32
  }
}

</mosaic_0001>

<llo_original>
// kernel: tpu_custom_call.1
$region0: #{tpu_custom_call.1}
  #allocation0 [shape = 'u32[]', space=smem, size = 0x4, offset = 0x4, fixed_abs, tag = 'smem constant byte address 0x4 - core index']
  #allocation1 [shape = 'u32[72,128]{1,0:T(1,128)}', space=vmem, size = 0x9000, scoped, tag = 'internal scratch']
  %s0 = inlined_call_operand.hbm [shape: f32[2,32,256], index: 0, kind: input, shape index: {}]
  %s1 = inlined_call_operand.vmem [shape: f32[32,2], index: 1, kind: input, shape index: {}]
  %s2 = inlined_call_operand.vmem [shape: f32[2,32], index: 2, kind: input, shape index: {}]
  %s3 = inlined_call_operand.hbm [shape: f32[2,32,256], index: 3, kind: output, shape index: {}]
  %s4 = sld [smem:[#allocation0]]
  $region49: #{tpu_custom_call.1} parent=0
    _
  %s6 = ssub.s32 1, %s4
  %s7 = scalar_select 0, %s6, %s4
  $region1: #{tpu_custom_call.1} parent=0
    #allocation2 [shape = 'u8[65536]{0}', space=vmem, size = 0x10000, scoped, tag = 'input window, operand 0']
    #allocation3 [shape = 's32[2]{0}', space=sflag, size = 0x8, scoped, tag = 'scoped memory for tpu_custom_call.1']
    #allocation4 [shape = 's32[2]{0}', space=sflag, size = 0x8, scoped, tag = 'scoped memory for tpu_custom_call.1']
    #allocation5 [shape = 'u8[65536]{0}', space=vmem, size = 0x10000, scoped, tag = 'output window, operand 0']
    %8 = vsyncpa [#allocation3], 0
    %s9 = scalar_lea.sflag [#allocation3], 1
    %10 = vsyncpa %s9, 0
    %11 = vsyncpa [#allocation4], 0
    %s12 = scalar_lea.sflag [#allocation4], 1
    %13 = vsyncpa %s12, 0
    loop: start=0, step=1, limit=4
    $region2: #{tpu_custom_call.1} parent=1 // loop_pre_header
      _
    $region3: #{tpu_custom_call.1} parent=1 // loop_header
      %s15 = sphi 0, %s19
      %p16 = scmp.ge.s32.totalorder %s15, 4
      %s25 = sphi 0, %s27
      %s28 = sphi 0, %s25
      %s29 = sphi 0, %s28
      %s45 = sphi 0, %s29
      %s49 = sphi 0, %s49
      %s51 = sphi 0, %s49
      %s52 = sphi 0, %s51
      %s66 = sphi 0, %s52
      %s70 = sphi 0, %s70
      %s72 = sphi 0, %s70
      %s73 = sphi 0, %s72
      %s87 = sphi 0, %s73
      %s93 = sphi 0, %s95
      %s96 = sphi 0, %s93
      %s97 = sphi 0, %s96
      %s113 = sphi 0, %s97
    $region4: #{tpu_custom_call.1} parent=1 // loop_header_branch
      %18 = sbr.rel (%p16) target = $region8
    $region5: #{tpu_custom_call.1} parent=1 // loop_body
      %s20 = ssub.s32 %s15, 1
      %s21 = ssub.s32 %s15, 2
      %s22 = sadd.s32 %s15, 1
      %s23 = ssub.s32 %s15, %s22
      %p24 = scmp.eq.s32.totalorder %s23, 0
      %s26 = sadd.s32 %s25, 1
      %s27 = scalar_select %p24, %s25, %s26
      %p30 = pneg %p24
      %p31 = scmp.eq.s32.totalorder %s15, 1
      %p32 = por %p30, %p31
      %p33 = scmp.ne.s32.totalorder %s25, %s28
      %p34 = scmp.eq.s32.totalorder %s15, 0
      %p35 = por %p33, %p34
      %p36 = scmp.ne.s32.totalorder %s25, %s28
      %p37 = scmp.eq.s32.totalorder %s20, 1
      %p38 = por %p36, %p37
      %p39 = scmp.ne.s32.totalorder %s28, %s29
      %p40 = scmp.eq.s32.totalorder %s20, 0
      %p41 = por %p39, %p40
      %p42 = scmp.ne.s32.totalorder %s28, %s29
      %p43 = scmp.eq.s32.totalorder %s21, 1
      %p44 = por %p42, %p43
      %p46 = scmp.ne.s32.totalorder %s29, %s45
      %p47 = scmp.eq.s32.totalorder %s21, 0
      %p48 = por %p46, %p47
      %s50 = sadd.s32 %s49, 1
      %p53 = scmp.eq.s32.totalorder %s15, 1
      %p54 = scmp.ne.s32.totalorder %s49, %s51
      %p55 = scmp.eq.s32.totalorder %s15, 0
      %p56 = por %p54, %p55
      %p57 = scmp.ne.s32.totalorder %s49, %s51
      %p58 = scmp.eq.s32.totalorder %s20, 1
      %p59 = por %p57, %p58
      %p60 = scmp.ne.s32.totalorder %s51, %s52
      %p61 = scmp.eq.s32.totalorder %s20, 0
      %p62 = por %p60, %p61
      %p63 = scmp.ne.s32.totalorder %s51, %s52
      %p64 = scmp.eq.s32.totalorder %s21, 1
      %p65 = por %p63, %p64
      %p67 = scmp.ne.s32.totalorder %s52, %s66
      %p68 = scmp.eq.s32.totalorder %s21, 0
      %p69 = por %p67, %p68
      %s71 = sadd.s32 %s70, 1
      %p74 = scmp.eq.s32.totalorder %s15, 1
      %p75 = scmp.ne.s32.totalorder %s70, %s72
      %p76 = scmp.eq.s32.totalorder %s15, 0
      %p77 = por %p75, %p76
      %p78 = scmp.ne.s32.totalorder %s70, %s72
      %p79 = scmp.eq.s32.totalorder %s20, 1
      %p80 = por %p78, %p79
      %p81 = scmp.ne.s32.totalorder %s72, %s73
      %p82 = scmp.eq.s32.totalorder %s20, 0
      %p83 = por %p81, %p82
      %p84 = scmp.ne.s32.totalorder %s72, %s73
      %p85 = scmp.eq.s32.totalorder %s21, 1
      %p86 = por %p84, %p85
      %p88 = scmp.ne.s32.totalorder %s73, %s87
      %p89 = scmp.eq.s32.totalorder %s21, 0
      %p90 = por %p88, %p89
      %s91 = ssub.s32 %s15, %s22
      %p92 = scmp.eq.s32.totalorder %s91, 0
      %s94 = sadd.s32 %s93, 1
      %s95 = scalar_select %p92, %s93, %s94
      %p98 = pneg %p92
      %p99 = scmp.eq.s32.totalorder %s15, 1
      %p100 = por %p98, %p99
      %p101 = scmp.ne.s32.totalorder %s93, %s96
      %p102 = scmp.eq.s32.totalorder %s15, 0
      %p103 = por %p101, %p102
      %p104 = scmp.ne.s32.totalorder %s93, %s96
      %p105 = scmp.eq.s32.totalorder %s20, 1
      %p106 = por %p104, %p105
      %p107 = scmp.ne.s32.totalorder %s96, %s97
      %p108 = scmp.eq.s32.totalorder %s20, 0
      %p109 = por %p107, %p108
      %p110 = scmp.ne.s32.totalorder %s96, %s97
      %p111 = scmp.eq.s32.totalorder %s21, 1
      %p112 = por %p110, %p111
      %p114 = scmp.ne.s32.totalorder %s97, %s113
      %p115 = scmp.eq.s32.totalorder %s21, 0
      %p116 = por %p114, %p115
      %p117 = scmp.le.s32.totalorder 1, %s15
      %p118 = scmp.lt.s32.totalorder %s15, 3
      %p119 = pnand %p117, %p118
      %p120 = pneg %p119
      // Predicated region
      $region9: #{tpu_custom_call.1} parent=5 // pred_check
        _
      $region10: #{tpu_custom_call.1} parent=5 // pred_check_branch
        %122 = sbr.rel (%p119) target = $region12
      $region11: #{tpu_custom_call.1} parent=5 // pred_region
        %s123 = ssub.s32 %s15, 1
        // Predicated region
        $region13: #{tpu_custom_call.1} parent=11 // pred_check
          %p124 = pneg %p62
        $region14: #{tpu_custom_call.1} parent=11 // pred_check_branch
          %126 = sbr.rel (%p124) target = $region16
        $region15: #{tpu_custom_call.1} parent=11 // pred_region
          _
        $region16: #{tpu_custom_call.1} parent=11 // pred_fallthru
          _
        // Predicated region
        $region17: #{tpu_custom_call.1} parent=11 // pred_check
          %p127 = pneg %p83
        $region18: #{tpu_custom_call.1} parent=11 // pred_check_branch
          %129 = sbr.rel (%p127) target = $region20
        $region19: #{tpu_custom_call.1} parent=11 // pred_region
          _
        $region20: #{tpu_custom_call.1} parent=11 // pred_fallthru
          _
      $region12: #{tpu_custom_call.1} parent=5 // pred_fallthru
        _
      %p130 = scmp.lt.s32.totalorder %s15, 2
      // Predicated region
      $region21: #{tpu_custom_call.1} parent=5 // pred_check
        %p131 = pneg %p130
      $region22: #{tpu_custom_call.1} parent=5 // pred_check_branch
        %133 = sbr.rel (%p131) target = $region24
      $region23: #{tpu_custom_call.1} parent=5 // pred_region
        // Predicated region
        $region25: #{tpu_custom_call.1} parent=23 // pred_check
          %p134 = pneg %p35
        $region26: #{tpu_custom_call.1} parent=23 // pred_check_branch
          %136 = sbr.rel (%p134) target = $region28
        $region27: #{tpu_custom_call.1} parent=23 // pred_region
          %s137 = sand.u32 %s25, 1
          %s138 = scalar_lea.sflag [#allocation3], %s137
          %s139 = sand.u32 %s25, 1
          %s140 = smul.addr %s139, 64
          %s141 = scalar_lea.vmem [#allocation2], %s140
          %143 = vsyncadd %s138, 0
          %s144 = smul.addr %s15, 8
          %s145 = smul.addr %s144, 8
          %s146 = scalar_lea.hbm %s0, %s145
          %s147 = sshll.u32 %s146, 4
          %s148 = int_to_ptr.hbm [resolvable:$true] %s147
          %s149 = sshll.u32 %s141, 4
          %s150 = int_to_ptr.vmem [resolvable:$true] %s149
          %155 = dma.hbm_to_vmem [thread:$0]  %s148, 1024, %s150, %s138, 256, 256, 16
        $region28: #{tpu_custom_call.1} parent=23 // pred_fallthru
          _
      $region24: #{tpu_custom_call.1} parent=5 // pred_fallthru
        _
      %p156 = scmp.le.s32.totalorder 1, %s15
      %p157 = scmp.lt.s32.totalorder %s15, 3
      %p158 = pnand %p156, %p157
      %p159 = pneg %p158
      // Predicated region
      $region29: #{tpu_custom_call.1} parent=5 // pred_check
        _
      $region30: #{tpu_custom_call.1} parent=5 // pred_check_branch
        %161 = sbr.rel (%p158) target = $region32
      $region31: #{tpu_custom_call.1} parent=5 // pred_region
        %s162 = ssub.s32 %s15, 1
        %s163 = sand.u32 %s28, 1
        %s164 = scalar_lea.sflag [#allocation3], %s163
        %s165 = sand.u32 %s28, 1
        %s166 = smul.addr %s165, 64
        %s167 = scalar_lea.vmem [#allocation2], %s166
        // Predicated region
        $region33: #{tpu_custom_call.1} parent=31 // pred_check
          %p168 = pneg %p41
        $region34: #{tpu_custom_call.1} parent=31 // pred_check_branch
          %170 = sbr.rel (%p168) target = $region36
        $region35: #{tpu_custom_call.1} parent=31 // pred_region
          %172 = dma.done %s164, 1024
        $region36: #{tpu_custom_call.1} parent=31 // pred_fallthru
          _
        %s173 = sand.u32 %s28, 1
        %s174 = scalar_lea.sflag [#allocation3], %s173
        %s175 = sand.u32 %s28, 1
        %s176 = smul.addr %s175, 64
        %s177 = scalar_lea.vmem [#allocation2], %s176
        %p178 = pneg %p41
        %p179 = pneg %p38
        %p180 = pneg %p62
        %p181 = pneg %p59
        %p182 = pneg %p83
        %p183 = pneg %p80
        %p184 = pneg %p109
        %p185 = pneg %p106
        %s186 = sand.u32 %s96, 1
        %s187 = scalar_lea.sflag [#allocation4], %s186
        %s188 = sand.u32 %s96, 1
        %s189 = smul.addr %s188, 64
        %s190 = scalar_lea.vmem [#allocation5], %s189
        %v191 = vld [vmem:[%s167] sm:$0xff]
        %v192 = vld [vmem:[%s167 + $0x8] sm:$0xff]
        %v193 = vld [vmem:[%s167 + $0x10] sm:$0xff]
        %v194 = vld [vmem:[%s167 + $0x18] sm:$0xff]
        %v195 = vld [vmem:[%s167 + $0x20] sm:$0xff]
        %v196 = vld [vmem:[%s167 + $0x28] sm:$0xff]
        %v197 = vld [vmem:[%s167 + $0x30] sm:$0xff]
        %v198 = vld [vmem:[%s167 + $0x38] sm:$0xff]
        %v199 = vadd.f32 %v191, %v192
        %200 = vadd.xlane.f32.xlu0 %v199
        %v201 = vpop.xlane.xlu0 %200
        %v202 = vadd.f32 %v193, %v194
        %203 = vadd.xlane.f32.xlu0 %v202
        %v204 = vpop.xlane.xlu0 %203
        %v205 = vadd.f32 %v195, %v196
        %206 = vadd.xlane.f32.xlu0 %v205
        %v207 = vpop.xlane.xlu0 %206
        %v208 = vadd.f32 %v197, %v198
        %209 = vadd.xlane.f32.xlu0 %v208
        %v210 = vpop.xlane.xlu0 %209
        %v211 = vadd.f32 %v201, 0.0
        %v212 = vadd.f32 %v204, 0.0
        %v213 = vadd.f32 %v207, 0.0
        %v214 = vadd.f32 %v210, 0.0
        %v215 = vmax.f32 %v191, %v192
        %216 = vmax.xlane.f32.xlu0 %v215
        %v217 = vpop.xlane.xlu0 %216
        %v218 = vmax.f32 %v193, %v194
        %219 = vmax.xlane.f32.xlu0 %v218
        %v220 = vpop.xlane.xlu0 %219
        %v221 = vmax.f32 %v195, %v196
        %222 = vmax.xlane.f32.xlu0 %v221
        %v223 = vpop.xlane.xlu0 %222
        %v224 = vmax.f32 %v197, %v198
        %225 = vmax.xlane.f32.xlu0 %v224
        %v226 = vpop.xlane.xlu0 %225
        %v227 = vmul.f32 %v211, 0.00390625
        %v228 = vmul.f32 %v212, 0.00390625
        %v229 = vmul.f32 %v213, 0.00390625
        %v230 = vmul.f32 %v214, 0.00390625
        %v235 = vlaneseq
        %v236 = vand.u32 %v235, 127
        %v237 = vperm.slane %v227, %v236
        %v238 = vadd.s32 %v236, 4294967288
        %v239 = vperm.slane %v228, %v238
        %vm240 = vcmask 130112
        %v241 = vsel %vm240, %v239, %v237
        %v242 = vadd.s32 %v236, 4294967280
        %v243 = vperm.slane %v229, %v242
        %vm244 = vcmask 195712
        %v245 = vsel %vm244, %v243, %v241
        %v246 = vadd.s32 %v236, 4294967272
        %v247 = vperm.slane %v230, %v246
        %vm248 = vcmask 261312
        %v249 = vsel %vm248, %v247, %v245
        %v255 = vperm.slane %v217, %v236
        %v256 = vperm.slane %v220, %v238
        %v257 = vsel %vm240, %v256, %v255
        %v258 = vperm.slane %v223, %v242
        %v259 = vsel %vm244, %v258, %v257
        %v260 = vperm.slane %v226, %v246
        %v261 = vsel %vm248, %v260, %v259
        %vm263 = vcmask 1040384
        %v264 = vsel %vm263, %v249, %v261
        %v265 = vld [vmem:[%s1] sm:$0xff]
        %v266 = vld [vmem:[%s1 + $0x8] sm:$0xff]
        %v267 = vld [vmem:[%s1 + $0x10] sm:$0xff]
        %v268 = vld [vmem:[%s1 + $0x18] sm:$0xff]
        %vm269 = vcmask 261120
        %v271 = vsel %vm269, %v264, 0
        %273 = vmatpush.msra.mxu0 0.0
        %274 = vmatpush.msra.mxu0 0.0
        %275 = vmatpush.msra.mxu0 0.0
        %276 = vmatpush.msra.mxu0 0.0
        %277 = vmatpush.msra.mxu0 0.0
        %278 = vmatpush.msra.mxu0 0.0
        %279 = vmatpush.msra.mxu0 0.0
        %280 = vmatpush.msra.mxu0 0.0
        %281 = vmatpush.msra.mxu0 0.0
        %282 = vmatpush.msra.mxu0 0.0
        %283 = vmatpush.msra.mxu0 0.0
        %284 = vmatpush.msra.mxu0 0.0
        %285 = vmatpush.msra.mxu0 %v268
        %286 = vmatpush.msra.mxu0 %v267
        %287 = vmatpush.msra.mxu0 %v266
        %288 = vmatpush.msra.mxu0 %v265
        %289 = vmatmul.f32.gmra.mxu0 %v271
        %v290 = vpop.f32.mrf.mxu0
        %v291 = vadd.f32 0.0, %v290
        %292 = vdwg.mxu0
        %v293 = vmax.f32 %v291, 0.0
        %v294 = vld [vmem:[%s2] sm:$0x3]
        %vm295 = vcmask 15360
        %v297 = vsel %vm295, %v293, 0
        %vm299 = vcmask 1041408
        %v301 = vsel %vm299, %v294, 0
        %303 = vmatpush.msra.mxu0 0.0
        %304 = vmatpush.msra.mxu0 0.0
        %305 = vmatpush.msra.mxu0 0.0
        %306 = vmatpush.msra.mxu0 0.0
        %307 = vmatpush.msra.mxu0 0.0
        %308 = vmatpush.msra.mxu0 0.0
        %309 = vmatpush.msra.mxu0 0.0
        %310 = vmatpush.msra.mxu0 0.0
        %311 = vmatpush.msra.mxu0 0.0
        %312 = vmatpush.msra.mxu0 0.0
        %313 = vmatpush.msra.mxu0 0.0
        %314 = vmatpush.msra.mxu0 0.0
        %315 = vmatpush.msra.mxu0 0.0
        %316 = vmatpush.msra.mxu0 0.0
        %317 = vmatpush.msra.mxu0 0.0
        %318 = vmatpush.msra.mxu0 %v301
        %319 = vmatmul.f32.gmra.mxu0 %v297
        %v320 = vpop.f32.mrf.mxu0
        %v321 = vadd.f32 0.0, %v320
        %322 = vdwg.mxu0
        %v324 = vrot.slane %v321, 1
        %v326 = vadd.f32 %v321, %v324
        %v327 = vxor.u32 %v326, 2147483648
        %v328 = vmul.f32 %v327, 1.442695
        %v329 = vpow.pop %v328
        %v330 = vadd.f32 %v329, 1.0
        %v331 = vrcp.pop %v330
        %v332 = vmul.f32 %v330, %v331
        %v333 = vsub.f32 1.0, %v332
        %v334 = vmul.f32 %v331, %v333
        %v335 = vadd.f32 %v331, %v334
        %vm336 = vweird.f32 %v330
        %vm337 = vweird.f32 %v331
        %vm338 = vmor %vm336, %vm337
        %v339 = vsel %vm338, %v331, %v335
        %v340 = vand.u32 2147483647, %v330
        %vm341 = vcmp.eq.f32.partialorder %v340, 8.507059e+37
        %v342 = vand.u32 %v330, 2147483648
        %v343 = vor.u32 1.1754944e-38, %v342
        %v344 = vsel %vm341, %v343, %v339
        %v345 = vmul.f32 1.0, %v344
        %v346 = vperm.slane %v345, 0
        %v347 = vlaneseq
        %v348 = vshrl.u32 %v347, 7
        %350 = vset.pattern.permute.xlu0 %v348
        %351 = vperm.xlu0 %350, %v346
        %v352 = vpop.permute.xlu0 %351
        %v353 = vlaneseq
        %v354 = vshrl.u32 %v353, 7
        %v355 = vadd.s32 %v354, 8
        %356 = vset.pattern.permute.xlu0 %v355
        %357 = vperm.xlu0 %356, %v346
        %v358 = vpop.permute.xlu0 %357
        %v359 = vlaneseq
        %v360 = vshrl.u32 %v359, 7
        %v361 = vadd.s32 %v360, 16
        %362 = vset.pattern.permute.xlu0 %v361
        %363 = vperm.xlu0 %362, %v346
        %v364 = vpop.permute.xlu0 %363
        %v365 = vlaneseq
        %v366 = vshrl.u32 %v365, 7
        %v367 = vadd.s32 %v366, 24
        %368 = vset.pattern.permute.xlu0 %v367
        %369 = vperm.xlu0 %368, %v346
        %v370 = vpop.permute.xlu0 %369
        %v371 = vmul.f32 %v191, %v352
        %v372 = vmul.f32 %v192, %v352
        %v373 = vmul.f32 %v193, %v358
        %v374 = vmul.f32 %v194, %v358
        %v375 = vmul.f32 %v195, %v364
        %v376 = vmul.f32 %v196, %v364
        %v377 = vmul.f32 %v197, %v370
        %v378 = vmul.f32 %v198, %v370
        %379 = vst [vmem:[%s190] sm:$0xff] %v371
        %380 = vst [vmem:[%s190 + $0x8] sm:$0xff] %v372
        %381 = vst [vmem:[%s190 + $0x10] sm:$0xff] %v373
        %382 = vst [vmem:[%s190 + $0x18] sm:$0xff] %v374
        %383 = vst [vmem:[%s190 + $0x20] sm:$0xff] %v375
        %384 = vst [vmem:[%s190 + $0x28] sm:$0xff] %v376
        %385 = vst [vmem:[%s190 + $0x30] sm:$0xff] %v377
        %386 = vst [vmem:[%s190 + $0x38] sm:$0xff] %v378
        %s387 = sand.u32 %s96, 1
        %s388 = scalar_lea.sflag [#allocation4], %s387
        %s389 = sand.u32 %s96, 1
        %s390 = smul.addr %s389, 64
        %s391 = scalar_lea.vmem [#allocation5], %s390
        // Predicated region
        $region37: #{tpu_custom_call.1} parent=31 // pred_check
          %p392 = pneg %p106
        $region38: #{tpu_custom_call.1} parent=31 // pred_check_branch
          %394 = sbr.rel (%p392) target = $region40
        $region39: #{tpu_custom_call.1} parent=31 // pred_region
          %396 = vsyncadd %s388, 0
          %s397 = smul.addr %s20, 8
          %s398 = smul.addr %s397, 8
          %s399 = scalar_lea.hbm %s3, %s398
          %s400 = sshll.u32 %s391, 4
          %s401 = int_to_ptr.vmem [resolvable:$true] %s400
          %s402 = sshll.u32 %s399, 4
          %s403 = int_to_ptr.hbm [resolvable:$true] %s402
          %408 = dma.vmem_to_hbm [thread:$0]  %s401, 1024, %s403, %s388, 256, 256, 16
        $region40: #{tpu_custom_call.1} parent=31 // pred_fallthru
          _
      $region32: #{tpu_custom_call.1} parent=5 // pred_fallthru
        _
      %p409 = scmp.le.s32.totalorder 2, %s15
      // Predicated region
      $region41: #{tpu_custom_call.1} parent=5 // pred_check
        %p410 = pneg %p409
      $region42: #{tpu_custom_call.1} parent=5 // pred_check_branch
        %412 = sbr.rel (%p410) target = $region44
      $region43: #{tpu_custom_call.1} parent=5 // pred_region
        %s413 = ssub.s32 %s15, 2
        // Predicated region
        $region45: #{tpu_custom_call.1} parent=43 // pred_check
          %p414 = pneg %p112
        $region46: #{tpu_custom_call.1} parent=43 // pred_check_branch
          %416 = sbr.rel (%p414) target = $region48
        $region47: #{tpu_custom_call.1} parent=43 // pred_region
          %s417 = sand.u32 %s97, 1
          %s418 = scalar_lea.sflag [#allocation4], %s417
          %s419 = sand.u32 %s97, 1
          %s420 = smul.addr %s419, 64
          %s421 = scalar_lea.vmem [#allocation5], %s420
          %423 = dma.done %s418, 1024
        $region48: #{tpu_custom_call.1} parent=43 // pred_fallthru
          _
      $region44: #{tpu_custom_call.1} parent=5 // pred_fallthru
        _
    $region6: #{tpu_custom_call.1} parent=1 // loop_footer
      %s19 = sadd.s32 1, %s15
    $region7: #{tpu_custom_call.1} parent=1 // loop_footer_branch
      %14 = sbr.rel target = $region3
    $region8: #{tpu_custom_call.1} parent=1 // loop_exit
      _
    %424 = vsyncpa [#allocation3], 1
    %s425 = scalar_lea.sflag [#allocation3], 1
    %426 = vsyncpa %s425, 1
    %427 = vsyncpa [#allocation4], 1
    %s428 = scalar_lea.sflag [#allocation4], 1
    %429 = vsyncpa %s428, 1

</llo_original>
